<compile_context>
chip_gen: v5e
topology: v5e:2x2
jax: 0.10.0
libtpu: 0.0.40
codegen_flags: <defaults>
</compile_context>

<pallas_src>
import functools

import jax
import jax.numpy as jnp
from jax.experimental import pallas as pl
from jax.experimental.pallas import tpu as pltpu


def _cnn_kernel(idsr_ref, pos_ref, w1_ref, wf_ref, bf_ref, out_ref, *, vocab):
    """Fused CNN forward for one batch tile.

    idsr_ref : (TB, S*V) int8  token id of position p repeated over its V lanes
    pos_ref  : (TB, S*H) bf16  position tensor, flattened per sequence
    w1_ref   : (S*V, OP) bf16  embedding folded through conv*decoder weight
    wf_ref   : (S*H, OP) bf16  fused conv*decoder weight (O padded to OP lanes)
    bf_ref   : (1,  OP)  f32   fused bias
    out_ref  : (TB, OP)  f32
    """
    # Vocab code [0..V-1, 0..V-1, ...] generated in-kernel (no operand / DMA).
    lane = jax.lax.broadcasted_iota(jnp.int32, idsr_ref.shape, 1)
    if (vocab & (vocab - 1)) == 0:
        vcode = lane & (vocab - 1)
    else:
        vcode = lane % vocab

    # One-hot of the token id within each position's V-lane group.
    # NOTE: out-of-range ids silently produce a zero row (PyTorch would raise).
    eq = idsr_ref[...].astype(jnp.int32) == vcode
    onehot = jnp.where(eq, 1.0, 0.0).astype(jnp.bfloat16)               # (TB, S*V)

    # Two independent MXU contractions, f32 accumulation:
    #   embedding path: onehot   @ (embbd @ Wf)  -> (TB, OP)
    #   position  path: pos_flat @ Wf            -> (TB, OP)
    acc = jnp.dot(onehot, w1_ref[...], preferred_element_type=jnp.float32)
    acc = acc + jnp.dot(pos_ref[...], wf_ref[...],
                        preferred_element_type=jnp.float32)
    out_ref[...] = acc + bf_ref[...]                                    # (TB, OP)


def cnn_prepare_params(emb, wc, bc, wd, bd):
    """One-time host-side weight folding (hoisted out of the per-call path).

    emb: (V, H)  nn.Embedding weight
    wc:  (Hc, 1, pint, H) nn.Conv2d weight     bc: (Hc,)
    wd:  (O, Hc) nn.Linear weight              bd: (O,)
    """
    V, H = emb.shape
    Hc, in_ch, pint, kw = wc.shape
    O = wd.shape[0]
    if in_ch != 1 or kw != H:
        raise ValueError("conv weight inconsistent with the CNN module definition")
    S = pint
    SH, SV = S * H, S * V
    OP = max(128, ((O + 127) // 128) * 128)            # lane-dense output width

    # Fuse conv (full-size kernel) with the decoder: Wf = Wc2 @ Wd.T, bf = bc@Wd.T+bd
    wc2 = jnp.transpose(wc.astype(jnp.float32).reshape(Hc, SH))          # (S*H, Hc)
    wf = wc2 @ wd.astype(jnp.float32).T                                  # (S*H, O)
    bf = bc.astype(jnp.float32) @ wd.astype(jnp.float32).T + bd.astype(jnp.float32)
    wf_pad = jnp.zeros((SH, OP), jnp.float32).at[:, :O].set(wf)
    bf_pad = jnp.zeros((1, OP), jnp.float32).at[:, :O].set(bf)

    # Fold the (block-diagonal) embedding through the fused weight:
    #   W1[p*V + v, :] = emb[v, :] @ Wf[p*H:(p+1)*H, :]
    w1 = jnp.einsum('vh,pho->pvo', emb.astype(jnp.float32),
                    wf_pad.reshape(S, H, OP)).reshape(SV, OP)            # (S*V, OP)

    return {
        "w1": w1.astype(jnp.bfloat16),
        "wf": wf_pad.astype(jnp.bfloat16),
        "bf": bf_pad,
    }


def _batch_tiling(batch):
    """Generation-aware batch tiling: one grid step per TensorCore."""
    try:
        kind = jax.devices()[0].device_kind.lower()
    except Exception:
        kind = ""
    cores = 2 if "v7" in kind else 1          # v7x: 2 TCs/chip; v5e/v6e: 1
    tile_b = -(-batch // cores)               # ceil
    tile_b = -(-tile_b // 32) * 32            # sublane packing for int8/bf16 blocks
    tile_b = min(tile_b, 2048)                # keep double-buffered VMEM small
    num_tiles = -(-batch // tile_b)
    return tile_b, num_tiles


@functools.partial(jax.jit, static_argnames=("out_features",))
def cnn_forward(ids, position, w1, wf, bf, *, out_features):
    """Batched CNN forward: out[b] = decoder(conv(emb(ids[b]) + position[b])).

    ids:      (B, S)    int token ids (S must equal pint)
    position: (B, S, H) f32
    w1/wf/bf: folded weights from cnn_prepare_params
    returns:  (B, out_features) f32
    """
    B, S = ids.shape
    SV, OP = w1.shape
    SH = wf.shape[0]
    V, H = SV // S, SH // S
    if position.shape != (B, S, H):
        raise ValueError("position shape inconsistent with ids / folded weights")

    # Per-call layout-only prep (no math): int8 id stream, bf16 activations.
    ids_rep = jnp.repeat(ids.astype(jnp.int8), V, axis=1)                # (B, S*V)
    pos_flat = position.astype(jnp.bfloat16).reshape(B, SH)              # (B, S*H)

    tile_b, num_tiles = _batch_tiling(B)
    Bp = tile_b * num_tiles
    if Bp != B:
        ids_rep = jnp.pad(ids_rep, ((0, Bp - B), (0, 0)))
        pos_flat = jnp.pad(pos_flat, ((0, Bp - B), (0, 0)))

    out = pl.pallas_call(
        functools.partial(_cnn_kernel, vocab=V),
        out_shape=jax.ShapeDtypeStruct((Bp, OP), jnp.float32),
        grid=(num_tiles,),
        in_specs=[
            pl.BlockSpec((tile_b, SV), lambda i: (i, 0)),   # int8 id stream
            pl.BlockSpec((tile_b, SH), lambda i: (i, 0)),   # bf16 position (flat)
            pl.BlockSpec((SV, OP), lambda i: (0, 0)),       # folded embedding weight
            pl.BlockSpec((SH, OP), lambda i: (0, 0)),       # fused conv*decoder weight
            pl.BlockSpec((1, OP), lambda i: (0, 0)),        # fused bias
        ],
        out_specs=pl.BlockSpec((tile_b, OP), lambda i: (i, 0)),
        compiler_params=pltpu.CompilerParams(
            dimension_semantics=("parallel",)),
    )(ids_rep, pos_flat, w1, wf, bf)

    return out[:B, :out_features]


if __name__ == "__main__":
    # SIZES: input_size (vocab) = 16, hidden_size = 32, pint = 8, output_size = 16
    V, H, PINT, O = 16, 32, 8, 16
    S = PINT            # forward pass only valid when sequence length == pint
    B = 512             # batch of independent sequences

    key = jax.random.PRNGKey(0)
    k_ids, k_pos, k_emb, k_wc, k_bc, k_wd, k_bd = jax.random.split(key, 7)

    # Parameters in PyTorch layouts:
    emb = jax.random.normal(k_emb, (V, H), jnp.float32) * 0.1           # Embedding(V, H)
    wc = jax.random.normal(k_wc, (H, 1, PINT, H), jnp.float32) * 0.05   # Conv2d weight
    bc = jax.random.normal(k_bc, (H,), jnp.float32) * 0.05
    wd = jax.random.normal(k_wd, (O, H), jnp.float32) * 0.1             # Linear weight
    bd = jax.random.normal(k_bd, (O,), jnp.float32) * 0.1

    ids = jax.random.randint(k_ids, (B, S), 0, V, jnp.int32)
    position = jax.random.normal(k_pos, (B, S, H), jnp.float32) * 0.1

    params = cnn_prepare_params(emb, wc, bc, wd, bd)    # one-time weight folding
    out = cnn_forward(ids, position, params["w1"], params["wf"], params["bf"],
                      out_features=O)
    out = jax.block_until_ready(out)

    # Pure-JAX f32 reference (unfused, follows the nn.Module exactly, batched)
    enc_ref = emb[ids]                                     # (B, S, H)
    inn_ref = enc_ref + position                           # (B, S, H)
    wc_r = wc.reshape(H, PINT, H)                          # (out_ch, p, h)
    conv_ref = jnp.einsum('bph,oph->bo', inn_ref, wc_r) + bc   # (B, H)
    ref = conv_ref @ wd.T + bd                             # (B, O)

    assert out.shape == (B, O), out.shape
    # bf16 operands with f32 accumulation -> loosened tolerance vs exact f32 ref.
    err = float(jnp.max(jnp.abs(out - ref)))
    assert err < 1e-2, err
    print("KERNEL_OK")
</pallas_src>

<mosaic_0001>
module attributes {stable_mosaic.version = 11 : i64} {
  func.func @_cnn_kernel(%arg0: i32, %arg1: memref<512x128xi8, #tpu.memory_space<vmem>>, %arg2: memref<512x256xbf16, #tpu.memory_space<vmem>>, %arg3: memref<128x128xbf16, #tpu.memory_space<vmem>>, %arg4: memref<256x128xbf16, #tpu.memory_space<vmem>>, %arg5: memref<1x128xf32, #tpu.memory_space<vmem>>, %arg6: memref<512x128xf32, #tpu.memory_space<vmem>>) attributes {dimension_semantics = [#tpu.dimension_semantics<parallel>], iteration_bounds = array<i64: 1>, scalar_prefetch = 0 : i64, scratch_operands = 0 : i64, tpu.core_type = #tpu.core_type<tc>, window_params = [{transform_indices = @transform_0, window_bounds = array<i64: 512, 128>}, {transform_indices = @transform_1, window_bounds = array<i64: 512, 256>}, {pipeline_mode = #tpu.pipeline_mode<synchronous>, transform_indices = @transform_2, window_bounds = array<i64: 128, 128>}, {pipeline_mode = #tpu.pipeline_mode<synchronous>, transform_indices = @transform_3, window_bounds = array<i64: 256, 128>}, {pipeline_mode = #tpu.pipeline_mode<synchronous>, transform_indices = @transform_4, window_bounds = array<i64: 1, 128>}, {transform_indices = @transform_5, window_bounds = array<i64: 512, 128>}]} {
    %0 = tpu.iota {dimensions = array<i32: 1>} : vector<512x128xi32>
    %c15_i32 = arith.constant 15 : i32
    %1 = vector.broadcast %c15_i32 : i32 to vector<512x128xi32>
    %2 = arith.andi %0, %1 : vector<512x128xi32>
    %c0 = arith.constant 0 : index
    %c0_0 = arith.constant 0 : index
    %3 = vector.load %arg1[%c0, %c0_0] : memref<512x128xi8, #tpu.memory_space<vmem>>, vector<512x128xi8>
    %4 = arith.extsi %3 : vector<512x128xi8> to vector<512x128xi32>
    %5 = arith.cmpi eq, %4, %2 : vector<512x128xi32>
    %cst = arith.constant 1.000000e+00 : f32
    %cst_1 = arith.constant 0.000000e+00 : f32
    %6 = vector.broadcast %cst : f32 to vector<512x128xf32>
    %7 = vector.broadcast %cst_1 : f32 to vector<512x128xf32>
    %8 = arith.select %5, %6, %7 : vector<512x128xi1>, vector<512x128xf32>
    %9 = arith.truncf %8 : vector<512x128xf32> to vector<512x128xbf16>
    %c0_2 = arith.constant 0 : index
    %c0_3 = arith.constant 0 : index
    %10 = vector.load %arg3[%c0_2, %c0_3] : memref<128x128xbf16, #tpu.memory_space<vmem>>, vector<128x128xbf16>
    %cst_4 = arith.constant dense<0.000000e+00> : vector<512x128xf32>
    %11 = tpu.matmul %9, %10, %cst_4 {dimension_numbers = #tpu.dot_dimension_numbers<[1], [0], [0], [1], [0, 0, 1, 1], [], []>} : vector<512x128xbf16>, vector<128x128xbf16>, vector<512x128xf32> -> vector<512x128xf32>
    %c0_5 = arith.constant 0 : index
    %c0_6 = arith.constant 0 : index
    %12 = vector.load %arg2[%c0_5, %c0_6] : memref<512x256xbf16, #tpu.memory_space<vmem>>, vector<512x256xbf16>
    %c0_7 = arith.constant 0 : index
    %c0_8 = arith.constant 0 : index
    %13 = vector.load %arg4[%c0_7, %c0_8] : memref<256x128xbf16, #tpu.memory_space<vmem>>, vector<256x128xbf16>
    %cst_9 = arith.constant dense<0.000000e+00> : vector<512x128xf32>
    %14 = tpu.matmul %12, %13, %cst_9 {dimension_numbers = #tpu.dot_dimension_numbers<[1], [0], [0], [1], [0, 0, 1, 1], [], []>} : vector<512x256xbf16>, vector<256x128xbf16>, vector<512x128xf32> -> vector<512x128xf32>
    %15 = arith.addf %11, %14 : vector<512x128xf32>
    %c0_10 = arith.constant 0 : index
    %c0_11 = arith.constant 0 : index
    %16 = vector.load %arg5[%c0_10, %c0_11] : memref<1x128xf32, #tpu.memory_space<vmem>>, vector<1x128xf32>
    %17 = vector.broadcast %16 : vector<1x128xf32> to vector<512x128xf32>
    %18 = arith.addf %15, %17 : vector<512x128xf32>
    %c0_12 = arith.constant 0 : index
    %c0_13 = arith.constant 0 : index
    %19 = vector.load %arg6[%c0_12, %c0_13] : memref<512x128xf32, #tpu.memory_space<vmem>>, vector<512x128xf32>
    tpu.vector_store %arg6[%c0_12, %c0_13], %18 {strides = array<i32>} : memref<512x128xf32, #tpu.memory_space<vmem>>, vector<512x128xf32>,
    return
  }
  func.func @transform_0(%arg0: i32) -> (i32, i32) {
    %c0_i32 = arith.constant 0 : i32
    %c0_i32_0 = arith.constant 0 : i32
    return %arg0, %c0_i32 : i32, i32
  }
  func.func @transform_1(%arg0: i32) -> (i32, i32) {
    %c0_i32 = arith.constant 0 : i32
    %c0_i32_0 = arith.constant 0 : i32
    return %arg0, %c0_i32 : i32, i32
  }
  func.func @transform_2(%arg0: i32) -> (i32, i32) {
    %c0_i32 = arith.constant 0 : i32
    %c0_i32_0 = arith.constant 0 : i32
    %c0_i32_1 = arith.constant 0 : i32
    return %c0_i32, %c0_i32_0 : i32, i32
  }
  func.func @transform_3(%arg0: i32) -> (i32, i32) {
    %c0_i32 = arith.constant 0 : i32
    %c0_i32_0 = arith.constant 0 : i32
    %c0_i32_1 = arith.constant 0 : i32
    return %c0_i32, %c0_i32_0 : i32, i32
  }
  func.func @transform_4(%arg0: i32) -> (i32, i32) {
    %c0_i32 = arith.constant 0 : i32
    %c0_i32_0 = arith.constant 0 : i32
    %c0_i32_1 = arith.constant 0 : i32
    return %c0_i32, %c0_i32_0 : i32, i32
  }
  func.func @transform_5(%arg0: i32) -> (i32, i32) {
    %c0_i32 = arith.constant 0 : i32
    %c0_i32_0 = arith.constant 0 : i32
    return %arg0, %c0_i32 : i32, i32
  }
}

</mosaic_0001>

<llo_original>
// kernel: cnn_forward.1
$region0: #{cnn_forward.1}
  #allocation0 [shape = 'u32[]', space=smem, size = 0x4, offset = 0x4, fixed_abs, tag = 'smem constant byte address 0x4 - core index']
  #allocation1 [shape = 'u32[72,128]{1,0:T(1,128)}', space=vmem, size = 0x9000, scoped, tag = 'internal scratch']
  %s0 = inlined_call_operand.vmem [shape: s8[512,128], index: 0, kind: input, shape index: {}]
  %s1 = inlined_call_operand.vmem [shape: bf16[512,256], index: 1, kind: input, shape index: {}]
  %s2 = inlined_call_operand.vmem [shape: bf16[128,128], index: 2, kind: input, shape index: {}]
  %s3 = inlined_call_operand.vmem [shape: bf16[256,128], index: 3, kind: input, shape index: {}]
  %s4 = inlined_call_operand.vmem [shape: f32[1,128], index: 4, kind: input, shape index: {}]
  %s5 = inlined_call_operand.vmem [shape: f32[512,128], index: 5, kind: output, shape index: {}]
  %s6 = sld [smem:[#allocation0]]
  $region30: #{cnn_forward.1} parent=0
    _
  %s8 = ssub.s32 1, %s6
  %s9 = scalar_select 0, %s8, %s6
  // Predicated region
  $region2: #{cnn_forward.1} parent=0 // pred_check
    _
  $region3: #{cnn_forward.1} parent=0 // pred_check_branch
    %11 = sbr.rel (0) target = $region5
  $region4: #{cnn_forward.1} parent=0 // pred_region
    _
  $region5: #{cnn_forward.1} parent=0 // pred_fallthru
    _
  // Predicated region
  $region6: #{cnn_forward.1} parent=0 // pred_check
    _
  $region7: #{cnn_forward.1} parent=0 // pred_check_branch
    %13 = sbr.rel (0) target = $region9
  $region8: #{cnn_forward.1} parent=0 // pred_region
    _
  $region9: #{cnn_forward.1} parent=0 // pred_fallthru
    _
  // Predicated region
  $region10: #{cnn_forward.1} parent=0 // pred_check
    _
  $region11: #{cnn_forward.1} parent=0 // pred_check_branch
    %15 = sbr.rel (0) target = $region13
  $region12: #{cnn_forward.1} parent=0 // pred_region
    _
  $region13: #{cnn_forward.1} parent=0 // pred_fallthru
    _
  // Predicated region
  $region14: #{cnn_forward.1} parent=0 // pred_check
    _
  $region15: #{cnn_forward.1} parent=0 // pred_check_branch
    %17 = sbr.rel (0) target = $region17
  $region16: #{cnn_forward.1} parent=0 // pred_region
    _
  $region17: #{cnn_forward.1} parent=0 // pred_fallthru
    _
  // Predicated region
  $region18: #{cnn_forward.1} parent=0 // pred_check
    _
  $region19: #{cnn_forward.1} parent=0 // pred_check_branch
    %19 = sbr.rel (0) target = $region21
  $region20: #{cnn_forward.1} parent=0 // pred_region
    _
  $region21: #{cnn_forward.1} parent=0 // pred_fallthru
    _
  %v20 = vlaneseq
  %v21 = vand.u32 %v20, 127
  %v22 = vand.u32 %v21, 15
  %v23 = vld [vmem:[%s0] sm:$0xff]
  %v24 = vld [vmem:[%s0 + $0x8] sm:$0xff]
  %v25 = vld [vmem:[%s0 + $0x10] sm:$0xff]
  %v26 = vld [vmem:[%s0 + $0x18] sm:$0xff]
  %v27 = vld [vmem:[%s0 + $0x20] sm:$0xff]
  %v28 = vld [vmem:[%s0 + $0x28] sm:$0xff]
  %v29 = vld [vmem:[%s0 + $0x30] sm:$0xff]
  %v30 = vld [vmem:[%s0 + $0x38] sm:$0xff]
  %v31 = vld [vmem:[%s0 + $0x40] sm:$0xff]
  %v32 = vld [vmem:[%s0 + $0x48] sm:$0xff]
  %v33 = vld [vmem:[%s0 + $0x50] sm:$0xff]
  %v34 = vld [vmem:[%s0 + $0x58] sm:$0xff]
  %v35 = vld [vmem:[%s0 + $0x60] sm:$0xff]
  %v36 = vld [vmem:[%s0 + $0x68] sm:$0xff]
  %v37 = vld [vmem:[%s0 + $0x70] sm:$0xff]
  %v38 = vld [vmem:[%s0 + $0x78] sm:$0xff]
  %v39 = vunpack.c.0.s8 %v23
  %v40 = vunpack.c.1.s8 %v23
  %v41 = vunpack.c.2.s8 %v23
  %v42 = vunpack.c.3.s8 %v23
  %v43 = vunpack.c.0.s8 %v24
  %v44 = vunpack.c.1.s8 %v24
  %v45 = vunpack.c.2.s8 %v24
  %v46 = vunpack.c.3.s8 %v24
  %v47 = vunpack.c.0.s8 %v25
  %v48 = vunpack.c.1.s8 %v25
  %v49 = vunpack.c.2.s8 %v25
  %v50 = vunpack.c.3.s8 %v25
  %v51 = vunpack.c.0.s8 %v26
  %v52 = vunpack.c.1.s8 %v26
  %v53 = vunpack.c.2.s8 %v26
  %v54 = vunpack.c.3.s8 %v26
  %v55 = vunpack.c.0.s8 %v27
  %v56 = vunpack.c.1.s8 %v27
  %v57 = vunpack.c.2.s8 %v27
  %v58 = vunpack.c.3.s8 %v27
  %v59 = vunpack.c.0.s8 %v28
  %v60 = vunpack.c.1.s8 %v28
  %v61 = vunpack.c.2.s8 %v28
  %v62 = vunpack.c.3.s8 %v28
  %v63 = vunpack.c.0.s8 %v29
  %v64 = vunpack.c.1.s8 %v29
  %v65 = vunpack.c.2.s8 %v29
  %v66 = vunpack.c.3.s8 %v29
  %v67 = vunpack.c.0.s8 %v30
  %v68 = vunpack.c.1.s8 %v30
  %v69 = vunpack.c.2.s8 %v30
  %v70 = vunpack.c.3.s8 %v30
  %v71 = vunpack.c.0.s8 %v31
  %v72 = vunpack.c.1.s8 %v31
  %v73 = vunpack.c.2.s8 %v31
  %v74 = vunpack.c.3.s8 %v31
  %v75 = vunpack.c.0.s8 %v32
  %v76 = vunpack.c.1.s8 %v32
  %v77 = vunpack.c.2.s8 %v32
  %v78 = vunpack.c.3.s8 %v32
  %v79 = vunpack.c.0.s8 %v33
  %v80 = vunpack.c.1.s8 %v33
  %v81 = vunpack.c.2.s8 %v33
  %v82 = vunpack.c.3.s8 %v33
  %v83 = vunpack.c.0.s8 %v34
  %v84 = vunpack.c.1.s8 %v34
  %v85 = vunpack.c.2.s8 %v34
  %v86 = vunpack.c.3.s8 %v34
  %v87 = vunpack.c.0.s8 %v35
  %v88 = vunpack.c.1.s8 %v35
  %v89 = vunpack.c.2.s8 %v35
  %v90 = vunpack.c.3.s8 %v35
  %v91 = vunpack.c.0.s8 %v36
  %v92 = vunpack.c.1.s8 %v36
  %v93 = vunpack.c.2.s8 %v36
  %v94 = vunpack.c.3.s8 %v36
  %v95 = vunpack.c.0.s8 %v37
  %v96 = vunpack.c.1.s8 %v37
  %v97 = vunpack.c.2.s8 %v37
  %v98 = vunpack.c.3.s8 %v37
  %v99 = vunpack.c.0.s8 %v38
  %v100 = vunpack.c.1.s8 %v38
  %v101 = vunpack.c.2.s8 %v38
  %v102 = vunpack.c.3.s8 %v38
  %vm103 = vcmp.eq.s32.totalorder %v39, %v22
  %vm104 = vcmp.eq.s32.totalorder %v40, %v22
  %vm105 = vcmp.eq.s32.totalorder %v41, %v22
  %vm106 = vcmp.eq.s32.totalorder %v42, %v22
  %vm107 = vcmp.eq.s32.totalorder %v43, %v22
  %vm108 = vcmp.eq.s32.totalorder %v44, %v22
  %vm109 = vcmp.eq.s32.totalorder %v45, %v22
  %vm110 = vcmp.eq.s32.totalorder %v46, %v22
  %vm111 = vcmp.eq.s32.totalorder %v47, %v22
  %vm112 = vcmp.eq.s32.totalorder %v48, %v22
  %vm113 = vcmp.eq.s32.totalorder %v49, %v22
  %vm114 = vcmp.eq.s32.totalorder %v50, %v22
  %vm115 = vcmp.eq.s32.totalorder %v51, %v22
  %vm116 = vcmp.eq.s32.totalorder %v52, %v22
  %vm117 = vcmp.eq.s32.totalorder %v53, %v22
  %vm118 = vcmp.eq.s32.totalorder %v54, %v22
  %vm119 = vcmp.eq.s32.totalorder %v55, %v22
  %vm120 = vcmp.eq.s32.totalorder %v56, %v22
  %vm121 = vcmp.eq.s32.totalorder %v57, %v22
  %vm122 = vcmp.eq.s32.totalorder %v58, %v22
  %vm123 = vcmp.eq.s32.totalorder %v59, %v22
  %vm124 = vcmp.eq.s32.totalorder %v60, %v22
  %vm125 = vcmp.eq.s32.totalorder %v61, %v22
  %vm126 = vcmp.eq.s32.totalorder %v62, %v22
  %vm127 = vcmp.eq.s32.totalorder %v63, %v22
  %vm128 = vcmp.eq.s32.totalorder %v64, %v22
  %vm129 = vcmp.eq.s32.totalorder %v65, %v22
  %vm130 = vcmp.eq.s32.totalorder %v66, %v22
  %vm131 = vcmp.eq.s32.totalorder %v67, %v22
  %vm132 = vcmp.eq.s32.totalorder %v68, %v22
  %vm133 = vcmp.eq.s32.totalorder %v69, %v22
  %vm134 = vcmp.eq.s32.totalorder %v70, %v22
  %vm135 = vcmp.eq.s32.totalorder %v71, %v22
  %vm136 = vcmp.eq.s32.totalorder %v72, %v22
  %vm137 = vcmp.eq.s32.totalorder %v73, %v22
  %vm138 = vcmp.eq.s32.totalorder %v74, %v22
  %vm139 = vcmp.eq.s32.totalorder %v75, %v22
  %vm140 = vcmp.eq.s32.totalorder %v76, %v22
  %vm141 = vcmp.eq.s32.totalorder %v77, %v22
  %vm142 = vcmp.eq.s32.totalorder %v78, %v22
  %vm143 = vcmp.eq.s32.totalorder %v79, %v22
  %vm144 = vcmp.eq.s32.totalorder %v80, %v22
  %vm145 = vcmp.eq.s32.totalorder %v81, %v22
  %vm146 = vcmp.eq.s32.totalorder %v82, %v22
  %vm147 = vcmp.eq.s32.totalorder %v83, %v22
  %vm148 = vcmp.eq.s32.totalorder %v84, %v22
  %vm149 = vcmp.eq.s32.totalorder %v85, %v22
  %vm150 = vcmp.eq.s32.totalorder %v86, %v22
  %vm151 = vcmp.eq.s32.totalorder %v87, %v22
  %vm152 = vcmp.eq.s32.totalorder %v88, %v22
  %vm153 = vcmp.eq.s32.totalorder %v89, %v22
  %vm154 = vcmp.eq.s32.totalorder %v90, %v22
  %vm155 = vcmp.eq.s32.totalorder %v91, %v22
  %vm156 = vcmp.eq.s32.totalorder %v92, %v22
  %vm157 = vcmp.eq.s32.totalorder %v93, %v22
  %vm158 = vcmp.eq.s32.totalorder %v94, %v22
  %vm159 = vcmp.eq.s32.totalorder %v95, %v22
  %vm160 = vcmp.eq.s32.totalorder %v96, %v22
  %vm161 = vcmp.eq.s32.totalorder %v97, %v22
  %vm162 = vcmp.eq.s32.totalorder %v98, %v22
  %vm163 = vcmp.eq.s32.totalorder %v99, %v22
  %vm164 = vcmp.eq.s32.totalorder %v100, %v22
  %vm165 = vcmp.eq.s32.totalorder %v101, %v22
  %vm166 = vcmp.eq.s32.totalorder %v102, %v22
  %v167 = vsel %vm103, 1.0, 0.0
  %v168 = vsel %vm104, 1.0, 0.0
  %v169 = vsel %vm105, 1.0, 0.0
  %v170 = vsel %vm106, 1.0, 0.0
  %v171 = vsel %vm107, 1.0, 0.0
  %v172 = vsel %vm108, 1.0, 0.0
  %v173 = vsel %vm109, 1.0, 0.0
  %v174 = vsel %vm110, 1.0, 0.0
  %v175 = vsel %vm111, 1.0, 0.0
  %v176 = vsel %vm112, 1.0, 0.0
  %v177 = vsel %vm113, 1.0, 0.0
  %v178 = vsel %vm114, 1.0, 0.0
  %v179 = vsel %vm115, 1.0, 0.0
  %v180 = vsel %vm116, 1.0, 0.0
  %v181 = vsel %vm117, 1.0, 0.0
  %v182 = vsel %vm118, 1.0, 0.0
  %v183 = vsel %vm119, 1.0, 0.0
  %v184 = vsel %vm120, 1.0, 0.0
  %v185 = vsel %vm121, 1.0, 0.0
  %v186 = vsel %vm122, 1.0, 0.0
  %v187 = vsel %vm123, 1.0, 0.0
  %v188 = vsel %vm124, 1.0, 0.0
  %v189 = vsel %vm125, 1.0, 0.0
  %v190 = vsel %vm126, 1.0, 0.0
  %v191 = vsel %vm127, 1.0, 0.0
  %v192 = vsel %vm128, 1.0, 0.0
  %v193 = vsel %vm129, 1.0, 0.0
  %v194 = vsel %vm130, 1.0, 0.0
  %v195 = vsel %vm131, 1.0, 0.0
  %v196 = vsel %vm132, 1.0, 0.0
  %v197 = vsel %vm133, 1.0, 0.0
  %v198 = vsel %vm134, 1.0, 0.0
  %v199 = vsel %vm135, 1.0, 0.0
  %v200 = vsel %vm136, 1.0, 0.0
  %v201 = vsel %vm137, 1.0, 0.0
  %v202 = vsel %vm138, 1.0, 0.0
  %v203 = vsel %vm139, 1.0, 0.0
  %v204 = vsel %vm140, 1.0, 0.0
  %v205 = vsel %vm141, 1.0, 0.0
  %v206 = vsel %vm142, 1.0, 0.0
  %v207 = vsel %vm143, 1.0, 0.0
  %v208 = vsel %vm144, 1.0, 0.0
  %v209 = vsel %vm145, 1.0, 0.0
  %v210 = vsel %vm146, 1.0, 0.0
  %v211 = vsel %vm147, 1.0, 0.0
  %v212 = vsel %vm148, 1.0, 0.0
  %v213 = vsel %vm149, 1.0, 0.0
  %v214 = vsel %vm150, 1.0, 0.0
  %v215 = vsel %vm151, 1.0, 0.0
  %v216 = vsel %vm152, 1.0, 0.0
  %v217 = vsel %vm153, 1.0, 0.0
  %v218 = vsel %vm154, 1.0, 0.0
  %v219 = vsel %vm155, 1.0, 0.0
  %v220 = vsel %vm156, 1.0, 0.0
  %v221 = vsel %vm157, 1.0, 0.0
  %v222 = vsel %vm158, 1.0, 0.0
  %v223 = vsel %vm159, 1.0, 0.0
  %v224 = vsel %vm160, 1.0, 0.0
  %v225 = vsel %vm161, 1.0, 0.0
  %v226 = vsel %vm162, 1.0, 0.0
  %v227 = vsel %vm163, 1.0, 0.0
  %v228 = vsel %vm164, 1.0, 0.0
  %v229 = vsel %vm165, 1.0, 0.0
  %v230 = vsel %vm166, 1.0, 0.0
  %v231 = vpack.c.bf16 %v168, %v167
  %v232 = vpack.c.bf16 %v170, %v169
  %v233 = vpack.c.bf16 %v172, %v171
  %v234 = vpack.c.bf16 %v174, %v173
  %v235 = vpack.c.bf16 %v176, %v175
  %v236 = vpack.c.bf16 %v178, %v177
  %v237 = vpack.c.bf16 %v180, %v179
  %v238 = vpack.c.bf16 %v182, %v181
  %v239 = vpack.c.bf16 %v184, %v183
  %v240 = vpack.c.bf16 %v186, %v185
  %v241 = vpack.c.bf16 %v188, %v187
  %v242 = vpack.c.bf16 %v190, %v189
  %v243 = vpack.c.bf16 %v192, %v191
  %v244 = vpack.c.bf16 %v194, %v193
  %v245 = vpack.c.bf16 %v196, %v195
  %v246 = vpack.c.bf16 %v198, %v197
  %v247 = vpack.c.bf16 %v200, %v199
  %v248 = vpack.c.bf16 %v202, %v201
  %v249 = vpack.c.bf16 %v204, %v203
  %v250 = vpack.c.bf16 %v206, %v205
  %v251 = vpack.c.bf16 %v208, %v207
  %v252 = vpack.c.bf16 %v210, %v209
  %v253 = vpack.c.bf16 %v212, %v211
  %v254 = vpack.c.bf16 %v214, %v213
  %v255 = vpack.c.bf16 %v216, %v215
  %v256 = vpack.c.bf16 %v218, %v217
  %v257 = vpack.c.bf16 %v220, %v219
  %v258 = vpack.c.bf16 %v222, %v221
  %v259 = vpack.c.bf16 %v224, %v223
  %v260 = vpack.c.bf16 %v226, %v225
  %v261 = vpack.c.bf16 %v228, %v227
  %v262 = vpack.c.bf16 %v230, %v229
  %v263 = vld [vmem:[%s2] sm:$0xf]
  %v264 = vld [vmem:[%s2 + $0x4] sm:$0xf]
  %v265 = vld [vmem:[%s2 + $0x8] sm:$0xf]
  %v266 = vld [vmem:[%s2 + $0xc] sm:$0xf]
  %v267 = vld [vmem:[%s2 + $0x10] sm:$0xf]
  %v268 = vld [vmem:[%s2 + $0x14] sm:$0xf]
  %v269 = vld [vmem:[%s2 + $0x18] sm:$0xf]
  %v270 = vld [vmem:[%s2 + $0x1c] sm:$0xf]
  %v271 = vld [vmem:[%s2 + $0x20] sm:$0xf]
  %v272 = vld [vmem:[%s2 + $0x24] sm:$0xf]
  %v273 = vld [vmem:[%s2 + $0x28] sm:$0xf]
  %v274 = vld [vmem:[%s2 + $0x2c] sm:$0xf]
  %v275 = vld [vmem:[%s2 + $0x30] sm:$0xf]
  %v276 = vld [vmem:[%s2 + $0x34] sm:$0xf]
  %v277 = vld [vmem:[%s2 + $0x38] sm:$0xf]
  %v278 = vld [vmem:[%s2 + $0x3c] sm:$0xf]
  %v279 = vld [vmem:[%s1] sm:$0xff]
  %v280 = vld [vmem:[%s1 + $0x8] sm:$0xff]
  %v281 = vld [vmem:[%s1 + $0x10] sm:$0xff]
  %v282 = vld [vmem:[%s1 + $0x18] sm:$0xff]
  %v283 = vld [vmem:[%s1 + $0x20] sm:$0xff]
  %v284 = vld [vmem:[%s1 + $0x28] sm:$0xff]
  %v285 = vld [vmem:[%s1 + $0x30] sm:$0xff]
  %v286 = vld [vmem:[%s1 + $0x38] sm:$0xff]
  %v287 = vld [vmem:[%s1 + $0x40] sm:$0xff]
  %v288 = vld [vmem:[%s1 + $0x48] sm:$0xff]
  %v289 = vld [vmem:[%s1 + $0x50] sm:$0xff]
  %v290 = vld [vmem:[%s1 + $0x58] sm:$0xff]
  %v291 = vld [vmem:[%s1 + $0x60] sm:$0xff]
  %v292 = vld [vmem:[%s1 + $0x68] sm:$0xff]
  %v293 = vld [vmem:[%s1 + $0x70] sm:$0xff]
  %v294 = vld [vmem:[%s1 + $0x78] sm:$0xff]
  %v295 = vld [vmem:[%s1 + $0x80] sm:$0xff]
  %v296 = vld [vmem:[%s1 + $0x88] sm:$0xff]
  %v297 = vld [vmem:[%s1 + $0x90] sm:$0xff]
  %v298 = vld [vmem:[%s1 + $0x98] sm:$0xff]
  %v299 = vld [vmem:[%s1 + $0xa0] sm:$0xff]
  %v300 = vld [vmem:[%s1 + $0xa8] sm:$0xff]
  %v301 = vld [vmem:[%s1 + $0xb0] sm:$0xff]
  %v302 = vld [vmem:[%s1 + $0xb8] sm:$0xff]
  %v303 = vld [vmem:[%s1 + $0xc0] sm:$0xff]
  %v304 = vld [vmem:[%s1 + $0xc8] sm:$0xff]
  %v305 = vld [vmem:[%s1 + $0xd0] sm:$0xff]
  %v306 = vld [vmem:[%s1 + $0xd8] sm:$0xff]
  %v307 = vld [vmem:[%s1 + $0xe0] sm:$0xff]
  %v308 = vld [vmem:[%s1 + $0xe8] sm:$0xff]
  %v309 = vld [vmem:[%s1 + $0xf0] sm:$0xff]
  %v310 = vld [vmem:[%s1 + $0xf8] sm:$0xff]
  %v311 = vld [vmem:[%s1 + $0x100] sm:$0xff]
  %v312 = vld [vmem:[%s1 + $0x108] sm:$0xff]
  %v313 = vld [vmem:[%s1 + $0x110] sm:$0xff]
  %v314 = vld [vmem:[%s1 + $0x118] sm:$0xff]
  %v315 = vld [vmem:[%s1 + $0x120] sm:$0xff]
  %v316 = vld [vmem:[%s1 + $0x128] sm:$0xff]
  %v317 = vld [vmem:[%s1 + $0x130] sm:$0xff]
  %v318 = vld [vmem:[%s1 + $0x138] sm:$0xff]
  %v319 = vld [vmem:[%s1 + $0x140] sm:$0xff]
  %v320 = vld [vmem:[%s1 + $0x148] sm:$0xff]
  %v321 = vld [vmem:[%s1 + $0x150] sm:$0xff]
  %v322 = vld [vmem:[%s1 + $0x158] sm:$0xff]
  %v323 = vld [vmem:[%s1 + $0x160] sm:$0xff]
  %v324 = vld [vmem:[%s1 + $0x168] sm:$0xff]
  %v325 = vld [vmem:[%s1 + $0x170] sm:$0xff]
  %v326 = vld [vmem:[%s1 + $0x178] sm:$0xff]
  %v327 = vld [vmem:[%s1 + $0x180] sm:$0xff]
  %v328 = vld [vmem:[%s1 + $0x188] sm:$0xff]
  %v329 = vld [vmem:[%s1 + $0x190] sm:$0xff]
  %v330 = vld [vmem:[%s1 + $0x198] sm:$0xff]
  %v331 = vld [vmem:[%s1 + $0x1a0] sm:$0xff]
  %v332 = vld [vmem:[%s1 + $0x1a8] sm:$0xff]
  %v333 = vld [vmem:[%s1 + $0x1b0] sm:$0xff]
  %v334 = vld [vmem:[%s1 + $0x1b8] sm:$0xff]
  %v335 = vld [vmem:[%s1 + $0x1c0] sm:$0xff]
  %v336 = vld [vmem:[%s1 + $0x1c8] sm:$0xff]
  %v337 = vld [vmem:[%s1 + $0x1d0] sm:$0xff]
  %v338 = vld [vmem:[%s1 + $0x1d8] sm:$0xff]
  %v339 = vld [vmem:[%s1 + $0x1e0] sm:$0xff]
  %v340 = vld [vmem:[%s1 + $0x1e8] sm:$0xff]
  %v341 = vld [vmem:[%s1 + $0x1f0] sm:$0xff]
  %v342 = vld [vmem:[%s1 + $0x1f8] sm:$0xff]
  %v343 = vld [vmem:[%s3] sm:$0xf]
  %v344 = vld [vmem:[%s3 + $0x4] sm:$0xf]
  %v345 = vld [vmem:[%s3 + $0x8] sm:$0xf]
  %v346 = vld [vmem:[%s3 + $0xc] sm:$0xf]
  %v347 = vld [vmem:[%s3 + $0x10] sm:$0xf]
  %v348 = vld [vmem:[%s3 + $0x14] sm:$0xf]
  %v349 = vld [vmem:[%s3 + $0x18] sm:$0xf]
  %v350 = vld [vmem:[%s3 + $0x1c] sm:$0xf]
  %v351 = vld [vmem:[%s3 + $0x20] sm:$0xf]
  %v352 = vld [vmem:[%s3 + $0x24] sm:$0xf]
  %v353 = vld [vmem:[%s3 + $0x28] sm:$0xf]
  %v354 = vld [vmem:[%s3 + $0x2c] sm:$0xf]
  %v355 = vld [vmem:[%s3 + $0x30] sm:$0xf]
  %v356 = vld [vmem:[%s3 + $0x34] sm:$0xf]
  %v357 = vld [vmem:[%s3 + $0x38] sm:$0xf]
  %v358 = vld [vmem:[%s3 + $0x3c] sm:$0xf]
  %v359 = vld [vmem:[%s3 + $0x40] sm:$0xf]
  %v360 = vld [vmem:[%s3 + $0x44] sm:$0xf]
  %v361 = vld [vmem:[%s3 + $0x48] sm:$0xf]
  %v362 = vld [vmem:[%s3 + $0x4c] sm:$0xf]
  %v363 = vld [vmem:[%s3 + $0x50] sm:$0xf]
  %v364 = vld [vmem:[%s3 + $0x54] sm:$0xf]
  %v365 = vld [vmem:[%s3 + $0x58] sm:$0xf]
  %v366 = vld [vmem:[%s3 + $0x5c] sm:$0xf]
  %v367 = vld [vmem:[%s3 + $0x60] sm:$0xf]
  %v368 = vld [vmem:[%s3 + $0x64] sm:$0xf]
  %v369 = vld [vmem:[%s3 + $0x68] sm:$0xf]
  %v370 = vld [vmem:[%s3 + $0x6c] sm:$0xf]
  %v371 = vld [vmem:[%s3 + $0x70] sm:$0xf]
  %v372 = vld [vmem:[%s3 + $0x74] sm:$0xf]
  %v373 = vld [vmem:[%s3 + $0x78] sm:$0xf]
  %v374 = vld [vmem:[%s3 + $0x7c] sm:$0xf]
  %v439 = vunpack.c.l.b16 %v279
  %v440 = vunpack.c.h.b16 %v279
  %v441 = vunpack.c.l.b16 %v280
  %v442 = vunpack.c.h.b16 %v280
  %v443 = vunpack.c.l.b16 %v281
  %v444 = vunpack.c.h.b16 %v281
  %v445 = vunpack.c.l.b16 %v282
  %v446 = vunpack.c.h.b16 %v282
  %v447 = vunpack.c.l.b16 %v283
  %v448 = vunpack.c.h.b16 %v283
  %v449 = vunpack.c.l.b16 %v284
  %v450 = vunpack.c.h.b16 %v284
  %v451 = vunpack.c.l.b16 %v285
  %v452 = vunpack.c.h.b16 %v285
  %v453 = vunpack.c.l.b16 %v286
  %v454 = vunpack.c.h.b16 %v286
  %v455 = vunpack.c.l.b16 %v287
  %v456 = vunpack.c.h.b16 %v287
  %v457 = vunpack.c.l.b16 %v288
  %v458 = vunpack.c.h.b16 %v288
  %v459 = vunpack.c.l.b16 %v289
  %v460 = vunpack.c.h.b16 %v289
  %v461 = vunpack.c.l.b16 %v290
  %v462 = vunpack.c.h.b16 %v290
  %v463 = vunpack.c.l.b16 %v291
  %v464 = vunpack.c.h.b16 %v291
  %v465 = vunpack.c.l.b16 %v292
  %v466 = vunpack.c.h.b16 %v292
  %v467 = vunpack.c.l.b16 %v293
  %v468 = vunpack.c.h.b16 %v293
  %v469 = vunpack.c.l.b16 %v294
  %v470 = vunpack.c.h.b16 %v294
  %v471 = vunpack.c.l.b16 %v295
  %v472 = vunpack.c.h.b16 %v295
  %v473 = vunpack.c.l.b16 %v296
  %v474 = vunpack.c.h.b16 %v296
  %v475 = vunpack.c.l.b16 %v297
  %v476 = vunpack.c.h.b16 %v297
  %v477 = vunpack.c.l.b16 %v298
  %v478 = vunpack.c.h.b16 %v298
  %v479 = vunpack.c.l.b16 %v299
  %v480 = vunpack.c.h.b16 %v299
  %v481 = vunpack.c.l.b16 %v300
  %v482 = vunpack.c.h.b16 %v300
  %v483 = vunpack.c.l.b16 %v301
  %v484 = vunpack.c.h.b16 %v301
  %v485 = vunpack.c.l.b16 %v302
  %v486 = vunpack.c.h.b16 %v302
  %v487 = vunpack.c.l.b16 %v303
  %v488 = vunpack.c.h.b16 %v303
  %v489 = vunpack.c.l.b16 %v304
  %v490 = vunpack.c.h.b16 %v304
  %v491 = vunpack.c.l.b16 %v305
  %v492 = vunpack.c.h.b16 %v305
  %v493 = vunpack.c.l.b16 %v306
  %v494 = vunpack.c.h.b16 %v306
  %v495 = vunpack.c.l.b16 %v307
  %v496 = vunpack.c.h.b16 %v307
  %v497 = vunpack.c.l.b16 %v308
  %v498 = vunpack.c.h.b16 %v308
  %v499 = vunpack.c.l.b16 %v309
  %v500 = vunpack.c.h.b16 %v309
  %v501 = vunpack.c.l.b16 %v310
  %v502 = vunpack.c.h.b16 %v310
  %v503 = vunpack.c.l.b16 %v311
  %v504 = vunpack.c.h.b16 %v311
  %v505 = vunpack.c.l.b16 %v312
  %v506 = vunpack.c.h.b16 %v312
  %v507 = vunpack.c.l.b16 %v313
  %v508 = vunpack.c.h.b16 %v313
  %v509 = vunpack.c.l.b16 %v314
  %v510 = vunpack.c.h.b16 %v314
  %v511 = vunpack.c.l.b16 %v315
  %v512 = vunpack.c.h.b16 %v315
  %v513 = vunpack.c.l.b16 %v316
  %v514 = vunpack.c.h.b16 %v316
  %v515 = vunpack.c.l.b16 %v317
  %v516 = vunpack.c.h.b16 %v317
  %v517 = vunpack.c.l.b16 %v318
  %v518 = vunpack.c.h.b16 %v318
  %v519 = vunpack.c.l.b16 %v319
  %v520 = vunpack.c.h.b16 %v319
  %v521 = vunpack.c.l.b16 %v320
  %v522 = vunpack.c.h.b16 %v320
  %v523 = vunpack.c.l.b16 %v321
  %v524 = vunpack.c.h.b16 %v321
  %v525 = vunpack.c.l.b16 %v322
  %v526 = vunpack.c.h.b16 %v322
  %v527 = vunpack.c.l.b16 %v323
  %v528 = vunpack.c.h.b16 %v323
  %v529 = vunpack.c.l.b16 %v324
  %v530 = vunpack.c.h.b16 %v324
  %v531 = vunpack.c.l.b16 %v325
  %v532 = vunpack.c.h.b16 %v325
  %v533 = vunpack.c.l.b16 %v326
  %v534 = vunpack.c.h.b16 %v326
  %v535 = vunpack.c.l.b16 %v327
  %v536 = vunpack.c.h.b16 %v327
  %v537 = vunpack.c.l.b16 %v328
  %v538 = vunpack.c.h.b16 %v328
  %v539 = vunpack.c.l.b16 %v329
  %v540 = vunpack.c.h.b16 %v329
  %v541 = vunpack.c.l.b16 %v330
  %v542 = vunpack.c.h.b16 %v330
  %v543 = vunpack.c.l.b16 %v331
  %v544 = vunpack.c.h.b16 %v331
  %v545 = vunpack.c.l.b16 %v332
  %v546 = vunpack.c.h.b16 %v332
  %v547 = vunpack.c.l.b16 %v333
  %v548 = vunpack.c.h.b16 %v333
  %v549 = vunpack.c.l.b16 %v334
  %v550 = vunpack.c.h.b16 %v334
  %v551 = vunpack.c.l.b16 %v335
  %v552 = vunpack.c.h.b16 %v335
  %v553 = vunpack.c.l.b16 %v336
  %v554 = vunpack.c.h.b16 %v336
  %v555 = vunpack.c.l.b16 %v337
  %v556 = vunpack.c.h.b16 %v337
  %v557 = vunpack.c.l.b16 %v338
  %v558 = vunpack.c.h.b16 %v338
  %v559 = vunpack.c.l.b16 %v339
  %v560 = vunpack.c.h.b16 %v339
  %v561 = vunpack.c.l.b16 %v340
  %v562 = vunpack.c.h.b16 %v340
  %v563 = vunpack.c.l.b16 %v341
  %v564 = vunpack.c.h.b16 %v341
  %v565 = vunpack.c.l.b16 %v342
  %v566 = vunpack.c.h.b16 %v342
  %v567 = vpack.c.b16 %v441, %v439
  %v568 = vpack.c.b16 %v442, %v440
  %v569 = vpack.c.b16 %v445, %v443
  %v570 = vpack.c.b16 %v446, %v444
  %v571 = vpack.c.b16 %v449, %v447
  %v572 = vpack.c.b16 %v450, %v448
  %v573 = vpack.c.b16 %v453, %v451
  %v574 = vpack.c.b16 %v454, %v452
  %v575 = vpack.c.b16 %v457, %v455
  %v576 = vpack.c.b16 %v458, %v456
  %v577 = vpack.c.b16 %v461, %v459
  %v578 = vpack.c.b16 %v462, %v460
  %v579 = vpack.c.b16 %v465, %v463
  %v580 = vpack.c.b16 %v466, %v464
  %v581 = vpack.c.b16 %v469, %v467
  %v582 = vpack.c.b16 %v470, %v468
  %v583 = vpack.c.b16 %v473, %v471
  %v584 = vpack.c.b16 %v474, %v472
  %v585 = vpack.c.b16 %v477, %v475
  %v586 = vpack.c.b16 %v478, %v476
  %v587 = vpack.c.b16 %v481, %v479
  %v588 = vpack.c.b16 %v482, %v480
  %v589 = vpack.c.b16 %v485, %v483
  %v590 = vpack.c.b16 %v486, %v484
  %v591 = vpack.c.b16 %v489, %v487
  %v592 = vpack.c.b16 %v490, %v488
  %v593 = vpack.c.b16 %v493, %v491
  %v594 = vpack.c.b16 %v494, %v492
  %v595 = vpack.c.b16 %v497, %v495
  %v596 = vpack.c.b16 %v498, %v496
  %v597 = vpack.c.b16 %v501, %v499
  %v598 = vpack.c.b16 %v502, %v500
  %v599 = vpack.c.b16 %v505, %v503
  %v600 = vpack.c.b16 %v506, %v504
  %v601 = vpack.c.b16 %v509, %v507
  %v602 = vpack.c.b16 %v510, %v508
  %v603 = vpack.c.b16 %v513, %v511
  %v604 = vpack.c.b16 %v514, %v512
  %v605 = vpack.c.b16 %v517, %v515
  %v606 = vpack.c.b16 %v518, %v516
  %v607 = vpack.c.b16 %v521, %v519
  %v608 = vpack.c.b16 %v522, %v520
  %v609 = vpack.c.b16 %v525, %v523
  %v610 = vpack.c.b16 %v526, %v524
  %v611 = vpack.c.b16 %v529, %v527
  %v612 = vpack.c.b16 %v530, %v528
  %v613 = vpack.c.b16 %v533, %v531
  %v614 = vpack.c.b16 %v534, %v532
  %v615 = vpack.c.b16 %v537, %v535
  %v616 = vpack.c.b16 %v538, %v536
  %v617 = vpack.c.b16 %v541, %v539
  %v618 = vpack.c.b16 %v542, %v540
  %v619 = vpack.c.b16 %v545, %v543
  %v620 = vpack.c.b16 %v546, %v544
  %v621 = vpack.c.b16 %v549, %v547
  %v622 = vpack.c.b16 %v550, %v548
  %v623 = vpack.c.b16 %v553, %v551
  %v624 = vpack.c.b16 %v554, %v552
  %v625 = vpack.c.b16 %v557, %v555
  %v626 = vpack.c.b16 %v558, %v556
  %v627 = vpack.c.b16 %v561, %v559
  %v628 = vpack.c.b16 %v562, %v560
  %v629 = vpack.c.b16 %v565, %v563
  %v630 = vpack.c.b16 %v566, %v564
  %v727 = vunpack.c.l.b16 %v343
  %v728 = vunpack.c.l.b16 %v344
  %v729 = vunpack.c.l.b16 %v345
  %v730 = vunpack.c.l.b16 %v346
  %v731 = vunpack.c.l.b16 %v347
  %v732 = vunpack.c.l.b16 %v348
  %v733 = vunpack.c.l.b16 %v349
  %v734 = vunpack.c.l.b16 %v350
  %v735 = vunpack.c.l.b16 %v351
  %v736 = vunpack.c.l.b16 %v352
  %v737 = vunpack.c.l.b16 %v353
  %v738 = vunpack.c.l.b16 %v354
  %v739 = vunpack.c.l.b16 %v355
  %v740 = vunpack.c.l.b16 %v356
  %v741 = vunpack.c.l.b16 %v357
  %v742 = vunpack.c.l.b16 %v358
  %v743 = vunpack.c.l.b16 %v359
  %v744 = vunpack.c.l.b16 %v360
  %v745 = vunpack.c.l.b16 %v361
  %v746 = vunpack.c.l.b16 %v362
  %v747 = vunpack.c.l.b16 %v363
  %v748 = vunpack.c.l.b16 %v364
  %v749 = vunpack.c.l.b16 %v365
  %v750 = vunpack.c.l.b16 %v366
  %v751 = vunpack.c.l.b16 %v367
  %v752 = vunpack.c.l.b16 %v368
  %v753 = vunpack.c.l.b16 %v369
  %v754 = vunpack.c.l.b16 %v370
  %v755 = vunpack.c.l.b16 %v371
  %v756 = vunpack.c.l.b16 %v372
  %v757 = vunpack.c.l.b16 %v373
  %v758 = vunpack.c.l.b16 %v374
  %v759 = vpack.c.b16 %v728, %v727
  %v760 = vpack.c.b16 %v730, %v729
  %v761 = vpack.c.b16 %v732, %v731
  %v762 = vpack.c.b16 %v734, %v733
  %v763 = vpack.c.b16 %v736, %v735
  %v764 = vpack.c.b16 %v738, %v737
  %v765 = vpack.c.b16 %v740, %v739
  %v766 = vpack.c.b16 %v742, %v741
  %v767 = vpack.c.b16 %v744, %v743
  %v768 = vpack.c.b16 %v746, %v745
  %v769 = vpack.c.b16 %v748, %v747
  %v770 = vpack.c.b16 %v750, %v749
  %v771 = vpack.c.b16 %v752, %v751
  %v772 = vpack.c.b16 %v754, %v753
  %v773 = vpack.c.b16 %v756, %v755
  %v774 = vpack.c.b16 %v758, %v757
  %791 = vmatpush.bf16.msra.mxu0 %v766
  %792 = vmatpush.bf16.msra.mxu0 %v765
  %793 = vmatpush.bf16.msra.mxu0 %v764
  %794 = vmatpush.bf16.msra.mxu0 %v763
  %795 = vmatpush.bf16.msra.mxu0 %v762
  %796 = vmatpush.bf16.msra.mxu0 %v761
  %797 = vmatpush.bf16.msra.mxu0 %v760
  %798 = vmatpush.bf16.msra.mxu0 %v759
  %799 = vmatmul.bf16.gmra.mxu0 %v567
  %v800 = vpop.f32.mrf.mxu0
  %v801 = vadd.f32 0.0, %v800
  %v802 = vpop.f32.mrf.mxu0
  %v803 = vadd.f32 0.0, %v802
  %804 = vmatmul.bf16.gmra.mxu0 %v569
  %v805 = vpop.f32.mrf.mxu0
  %v806 = vadd.f32 0.0, %v805
  %v807 = vpop.f32.mrf.mxu0
  %v808 = vadd.f32 0.0, %v807
  %809 = vmatmul.bf16.gmra.mxu0 %v571
  %v810 = vpop.f32.mrf.mxu0
  %v811 = vadd.f32 0.0, %v810
  %v812 = vpop.f32.mrf.mxu0
  %v813 = vadd.f32 0.0, %v812
  %814 = vmatmul.bf16.gmra.mxu0 %v573
  %v815 = vpop.f32.mrf.mxu0
  %v816 = vadd.f32 0.0, %v815
  %v817 = vpop.f32.mrf.mxu0
  %v818 = vadd.f32 0.0, %v817
  %819 = vmatmul.bf16.gmra.mxu0 %v575
  %v820 = vpop.f32.mrf.mxu0
  %v821 = vadd.f32 0.0, %v820
  %v822 = vpop.f32.mrf.mxu0
  %v823 = vadd.f32 0.0, %v822
  %824 = vmatmul.bf16.gmra.mxu0 %v577
  %v825 = vpop.f32.mrf.mxu0
  %v826 = vadd.f32 0.0, %v825
  %v827 = vpop.f32.mrf.mxu0
  %v828 = vadd.f32 0.0, %v827
  %829 = vmatmul.bf16.gmra.mxu0 %v579
  %v830 = vpop.f32.mrf.mxu0
  %v831 = vadd.f32 0.0, %v830
  %v832 = vpop.f32.mrf.mxu0
  %v833 = vadd.f32 0.0, %v832
  %834 = vmatmul.bf16.gmra.mxu0 %v581
  %v835 = vpop.f32.mrf.mxu0
  %v836 = vadd.f32 0.0, %v835
  %v837 = vpop.f32.mrf.mxu0
  %v838 = vadd.f32 0.0, %v837
  %839 = vmatmul.bf16.gmra.mxu0 %v583
  %v840 = vpop.f32.mrf.mxu0
  %v841 = vadd.f32 0.0, %v840
  %v842 = vpop.f32.mrf.mxu0
  %v843 = vadd.f32 0.0, %v842
  %844 = vmatmul.bf16.gmra.mxu0 %v585
  %v845 = vpop.f32.mrf.mxu0
  %v846 = vadd.f32 0.0, %v845
  %v847 = vpop.f32.mrf.mxu0
  %v848 = vadd.f32 0.0, %v847
  %849 = vmatmul.bf16.gmra.mxu0 %v587
  %v850 = vpop.f32.mrf.mxu0
  %v851 = vadd.f32 0.0, %v850
  %v852 = vpop.f32.mrf.mxu0
  %v853 = vadd.f32 0.0, %v852
  %854 = vmatmul.bf16.gmra.mxu0 %v589
  %v855 = vpop.f32.mrf.mxu0
  %v856 = vadd.f32 0.0, %v855
  %v857 = vpop.f32.mrf.mxu0
  %v858 = vadd.f32 0.0, %v857
  %859 = vmatmul.bf16.gmra.mxu0 %v591
  %v860 = vpop.f32.mrf.mxu0
  %v861 = vadd.f32 0.0, %v860
  %v862 = vpop.f32.mrf.mxu0
  %v863 = vadd.f32 0.0, %v862
  %864 = vmatmul.bf16.gmra.mxu0 %v593
  %v865 = vpop.f32.mrf.mxu0
  %v866 = vadd.f32 0.0, %v865
  %v867 = vpop.f32.mrf.mxu0
  %v868 = vadd.f32 0.0, %v867
  %869 = vmatmul.bf16.gmra.mxu0 %v595
  %v870 = vpop.f32.mrf.mxu0
  %v871 = vadd.f32 0.0, %v870
  %v872 = vpop.f32.mrf.mxu0
  %v873 = vadd.f32 0.0, %v872
  %874 = vmatmul.bf16.gmra.mxu0 %v597
  %v875 = vpop.f32.mrf.mxu0
  %v876 = vadd.f32 0.0, %v875
  %v877 = vpop.f32.mrf.mxu0
  %v878 = vadd.f32 0.0, %v877
  %879 = vmatmul.bf16.gmra.mxu0 %v599
  %v880 = vpop.f32.mrf.mxu0
  %v881 = vadd.f32 0.0, %v880
  %v882 = vpop.f32.mrf.mxu0
  %v883 = vadd.f32 0.0, %v882
  %884 = vmatmul.bf16.gmra.mxu0 %v601
  %v885 = vpop.f32.mrf.mxu0
  %v886 = vadd.f32 0.0, %v885
  %v887 = vpop.f32.mrf.mxu0
  %v888 = vadd.f32 0.0, %v887
  %889 = vmatmul.bf16.gmra.mxu0 %v603
  %v890 = vpop.f32.mrf.mxu0
  %v891 = vadd.f32 0.0, %v890
  %v892 = vpop.f32.mrf.mxu0
  %v893 = vadd.f32 0.0, %v892
  %894 = vmatmul.bf16.gmra.mxu0 %v605
  %v895 = vpop.f32.mrf.mxu0
  %v896 = vadd.f32 0.0, %v895
  %v897 = vpop.f32.mrf.mxu0
  %v898 = vadd.f32 0.0, %v897
  %899 = vmatmul.bf16.gmra.mxu0 %v607
  %v900 = vpop.f32.mrf.mxu0
  %v901 = vadd.f32 0.0, %v900
  %v902 = vpop.f32.mrf.mxu0
  %v903 = vadd.f32 0.0, %v902
  %904 = vmatmul.bf16.gmra.mxu0 %v609
  %v905 = vpop.f32.mrf.mxu0
  %v906 = vadd.f32 0.0, %v905
  %v907 = vpop.f32.mrf.mxu0
  %v908 = vadd.f32 0.0, %v907
  %909 = vmatmul.bf16.gmra.mxu0 %v611
  %v910 = vpop.f32.mrf.mxu0
  %v911 = vadd.f32 0.0, %v910
  %v912 = vpop.f32.mrf.mxu0
  %v913 = vadd.f32 0.0, %v912
  %914 = vmatmul.bf16.gmra.mxu0 %v613
  %v915 = vpop.f32.mrf.mxu0
  %v916 = vadd.f32 0.0, %v915
  %v917 = vpop.f32.mrf.mxu0
  %v918 = vadd.f32 0.0, %v917
  %919 = vmatmul.bf16.gmra.mxu0 %v615
  %v920 = vpop.f32.mrf.mxu0
  %v921 = vadd.f32 0.0, %v920
  %v922 = vpop.f32.mrf.mxu0
  %v923 = vadd.f32 0.0, %v922
  %924 = vmatmul.bf16.gmra.mxu0 %v617
  %v925 = vpop.f32.mrf.mxu0
  %v926 = vadd.f32 0.0, %v925
  %v927 = vpop.f32.mrf.mxu0
  %v928 = vadd.f32 0.0, %v927
  %929 = vmatmul.bf16.gmra.mxu0 %v619
  %v930 = vpop.f32.mrf.mxu0
  %v931 = vadd.f32 0.0, %v930
  %v932 = vpop.f32.mrf.mxu0
  %v933 = vadd.f32 0.0, %v932
  %934 = vmatmul.bf16.gmra.mxu0 %v621
  %v935 = vpop.f32.mrf.mxu0
  %v936 = vadd.f32 0.0, %v935
  %v937 = vpop.f32.mrf.mxu0
  %v938 = vadd.f32 0.0, %v937
  %939 = vmatmul.bf16.gmra.mxu0 %v623
  %v940 = vpop.f32.mrf.mxu0
  %v941 = vadd.f32 0.0, %v940
  %v942 = vpop.f32.mrf.mxu0
  %v943 = vadd.f32 0.0, %v942
  %944 = vmatmul.bf16.gmra.mxu0 %v625
  %v945 = vpop.f32.mrf.mxu0
  %v946 = vadd.f32 0.0, %v945
  %v947 = vpop.f32.mrf.mxu0
  %v948 = vadd.f32 0.0, %v947
  %949 = vmatmul.bf16.gmra.mxu0 %v627
  %v950 = vpop.f32.mrf.mxu0
  %v951 = vadd.f32 0.0, %v950
  %v952 = vpop.f32.mrf.mxu0
  %v953 = vadd.f32 0.0, %v952
  %954 = vmatmul.bf16.gmra.mxu0 %v629
  %v955 = vpop.f32.mrf.mxu0
  %v956 = vadd.f32 0.0, %v955
  %v957 = vpop.f32.mrf.mxu0
  %v958 = vadd.f32 0.0, %v957
  %959 = vdwg.mxu0
  %960 = vmatpush.bf16.msra.mxu0 %v774
  %961 = vmatpush.bf16.msra.mxu0 %v773
  %962 = vmatpush.bf16.msra.mxu0 %v772
  %963 = vmatpush.bf16.msra.mxu0 %v771
  %964 = vmatpush.bf16.msra.mxu0 %v770
  %965 = vmatpush.bf16.msra.mxu0 %v769
  %966 = vmatpush.bf16.msra.mxu0 %v768
  %967 = vmatpush.bf16.msra.mxu0 %v767
  %968 = vmatmul.bf16.gmra.mxu0 %v568
  %v969 = vpop.f32.mrf.mxu0
  %v970 = vadd.f32 %v801, %v969
  %v971 = vpop.f32.mrf.mxu0
  %v972 = vadd.f32 %v803, %v971
  %973 = vmatmul.bf16.gmra.mxu0 %v570
  %v974 = vpop.f32.mrf.mxu0
  %v975 = vadd.f32 %v806, %v974
  %v976 = vpop.f32.mrf.mxu0
  %v977 = vadd.f32 %v808, %v976
  %978 = vmatmul.bf16.gmra.mxu0 %v572
  %v979 = vpop.f32.mrf.mxu0
  %v980 = vadd.f32 %v811, %v979
  %v981 = vpop.f32.mrf.mxu0
  %v982 = vadd.f32 %v813, %v981
  %983 = vmatmul.bf16.gmra.mxu0 %v574
  %v984 = vpop.f32.mrf.mxu0
  %v985 = vadd.f32 %v816, %v984
  %v986 = vpop.f32.mrf.mxu0
  %v987 = vadd.f32 %v818, %v986
  %988 = vmatmul.bf16.gmra.mxu0 %v576
  %v989 = vpop.f32.mrf.mxu0
  %v990 = vadd.f32 %v821, %v989
  %v991 = vpop.f32.mrf.mxu0
  %v992 = vadd.f32 %v823, %v991
  %993 = vmatmul.bf16.gmra.mxu0 %v578
  %v994 = vpop.f32.mrf.mxu0
  %v995 = vadd.f32 %v826, %v994
  %v996 = vpop.f32.mrf.mxu0
  %v997 = vadd.f32 %v828, %v996
  %998 = vmatmul.bf16.gmra.mxu0 %v580
  %v999 = vpop.f32.mrf.mxu0
  %v1000 = vadd.f32 %v831, %v999
  %v1001 = vpop.f32.mrf.mxu0
  %v1002 = vadd.f32 %v833, %v1001
  %1003 = vmatmul.bf16.gmra.mxu0 %v582
  %v1004 = vpop.f32.mrf.mxu0
  %v1005 = vadd.f32 %v836, %v1004
  %v1006 = vpop.f32.mrf.mxu0
  %v1007 = vadd.f32 %v838, %v1006
  %1008 = vmatmul.bf16.gmra.mxu0 %v584
  %v1009 = vpop.f32.mrf.mxu0
  %v1010 = vadd.f32 %v841, %v1009
  %v1011 = vpop.f32.mrf.mxu0
  %v1012 = vadd.f32 %v843, %v1011
  %1013 = vmatmul.bf16.gmra.mxu0 %v586
  %v1014 = vpop.f32.mrf.mxu0
  %v1015 = vadd.f32 %v846, %v1014
  %v1016 = vpop.f32.mrf.mxu0
  %v1017 = vadd.f32 %v848, %v1016
  %1018 = vmatmul.bf16.gmra.mxu0 %v588
  %v1019 = vpop.f32.mrf.mxu0
  %v1020 = vadd.f32 %v851, %v1019
  %v1021 = vpop.f32.mrf.mxu0
  %v1022 = vadd.f32 %v853, %v1021
  %1023 = vmatmul.bf16.gmra.mxu0 %v590
  %v1024 = vpop.f32.mrf.mxu0
  %v1025 = vadd.f32 %v856, %v1024
  %v1026 = vpop.f32.mrf.mxu0
  %v1027 = vadd.f32 %v858, %v1026
  %1028 = vmatmul.bf16.gmra.mxu0 %v592
  %v1029 = vpop.f32.mrf.mxu0
  %v1030 = vadd.f32 %v861, %v1029
  %v1031 = vpop.f32.mrf.mxu0
  %v1032 = vadd.f32 %v863, %v1031
  %1033 = vmatmul.bf16.gmra.mxu0 %v594
  %v1034 = vpop.f32.mrf.mxu0
  %v1035 = vadd.f32 %v866, %v1034
  %v1036 = vpop.f32.mrf.mxu0
  %v1037 = vadd.f32 %v868, %v1036
  %1038 = vmatmul.bf16.gmra.mxu0 %v596
  %v1039 = vpop.f32.mrf.mxu0
  %v1040 = vadd.f32 %v871, %v1039
  %v1041 = vpop.f32.mrf.mxu0
  %v1042 = vadd.f32 %v873, %v1041
  %1043 = vmatmul.bf16.gmra.mxu0 %v598
  %v1044 = vpop.f32.mrf.mxu0
  %v1045 = vadd.f32 %v876, %v1044
  %v1046 = vpop.f32.mrf.mxu0
  %v1047 = vadd.f32 %v878, %v1046
  %1048 = vmatmul.bf16.gmra.mxu0 %v600
  %v1049 = vpop.f32.mrf.mxu0
  %v1050 = vadd.f32 %v881, %v1049
  %v1051 = vpop.f32.mrf.mxu0
  %v1052 = vadd.f32 %v883, %v1051
  %1053 = vmatmul.bf16.gmra.mxu0 %v602
  %v1054 = vpop.f32.mrf.mxu0
  %v1055 = vadd.f32 %v886, %v1054
  %v1056 = vpop.f32.mrf.mxu0
  %v1057 = vadd.f32 %v888, %v1056
  %1058 = vmatmul.bf16.gmra.mxu0 %v604
  %v1059 = vpop.f32.mrf.mxu0
  %v1060 = vadd.f32 %v891, %v1059
  %v1061 = vpop.f32.mrf.mxu0
  %v1062 = vadd.f32 %v893, %v1061
  %1063 = vmatmul.bf16.gmra.mxu0 %v606
  %v1064 = vpop.f32.mrf.mxu0
  %v1065 = vadd.f32 %v896, %v1064
  %v1066 = vpop.f32.mrf.mxu0
  %v1067 = vadd.f32 %v898, %v1066
  %1068 = vmatmul.bf16.gmra.mxu0 %v608
  %v1069 = vpop.f32.mrf.mxu0
  %v1070 = vadd.f32 %v901, %v1069
  %v1071 = vpop.f32.mrf.mxu0
  %v1072 = vadd.f32 %v903, %v1071
  %1073 = vmatmul.bf16.gmra.mxu0 %v610
  %v1074 = vpop.f32.mrf.mxu0
  %v1075 = vadd.f32 %v906, %v1074
  %v1076 = vpop.f32.mrf.mxu0
  %v1077 = vadd.f32 %v908, %v1076
  %1078 = vmatmul.bf16.gmra.mxu0 %v612
  %v1079 = vpop.f32.mrf.mxu0
  %v1080 = vadd.f32 %v911, %v1079
  %v1081 = vpop.f32.mrf.mxu0
  %v1082 = vadd.f32 %v913, %v1081
  %1083 = vmatmul.bf16.gmra.mxu0 %v614
  %v1084 = vpop.f32.mrf.mxu0
  %v1085 = vadd.f32 %v916, %v1084
  %v1086 = vpop.f32.mrf.mxu0
  %v1087 = vadd.f32 %v918, %v1086
  %1088 = vmatmul.bf16.gmra.mxu0 %v616
  %v1089 = vpop.f32.mrf.mxu0
  %v1090 = vadd.f32 %v921, %v1089
  %v1091 = vpop.f32.mrf.mxu0
  %v1092 = vadd.f32 %v923, %v1091
  %1093 = vmatmul.bf16.gmra.mxu0 %v618
  %v1094 = vpop.f32.mrf.mxu0
  %v1095 = vadd.f32 %v926, %v1094
  %v1096 = vpop.f32.mrf.mxu0
  %v1097 = vadd.f32 %v928, %v1096
  %1098 = vmatmul.bf16.gmra.mxu0 %v620
  %v1099 = vpop.f32.mrf.mxu0
  %v1100 = vadd.f32 %v931, %v1099
  %v1101 = vpop.f32.mrf.mxu0
  %v1102 = vadd.f32 %v933, %v1101
  %1103 = vmatmul.bf16.gmra.mxu0 %v622
  %v1104 = vpop.f32.mrf.mxu0
  %v1105 = vadd.f32 %v936, %v1104
  %v1106 = vpop.f32.mrf.mxu0
  %v1107 = vadd.f32 %v938, %v1106
  %1108 = vmatmul.bf16.gmra.mxu0 %v624
  %v1109 = vpop.f32.mrf.mxu0
  %v1110 = vadd.f32 %v941, %v1109
  %v1111 = vpop.f32.mrf.mxu0
  %v1112 = vadd.f32 %v943, %v1111
  %1113 = vmatmul.bf16.gmra.mxu0 %v626
  %v1114 = vpop.f32.mrf.mxu0
  %v1115 = vadd.f32 %v946, %v1114
  %v1116 = vpop.f32.mrf.mxu0
  %v1117 = vadd.f32 %v948, %v1116
  %1118 = vmatmul.bf16.gmra.mxu0 %v628
  %v1119 = vpop.f32.mrf.mxu0
  %v1120 = vadd.f32 %v951, %v1119
  %v1121 = vpop.f32.mrf.mxu0
  %v1122 = vadd.f32 %v953, %v1121
  %1123 = vmatmul.bf16.gmra.mxu0 %v630
  %v1124 = vpop.f32.mrf.mxu0
  %v1125 = vadd.f32 %v956, %v1124
  %v1126 = vpop.f32.mrf.mxu0
  %v1127 = vadd.f32 %v958, %v1126
  %1128 = vdwg.mxu0
  %v1145 = vunpack.c.l.b16 %v263
  %v1146 = vunpack.c.l.b16 %v264
  %v1147 = vunpack.c.l.b16 %v265
  %v1148 = vunpack.c.l.b16 %v266
  %v1149 = vunpack.c.l.b16 %v267
  %v1150 = vunpack.c.l.b16 %v268
  %v1151 = vunpack.c.l.b16 %v269
  %v1152 = vunpack.c.l.b16 %v270
  %v1153 = vunpack.c.l.b16 %v271
  %v1154 = vunpack.c.l.b16 %v272
  %v1155 = vunpack.c.l.b16 %v273
  %v1156 = vunpack.c.l.b16 %v274
  %v1157 = vunpack.c.l.b16 %v275
  %v1158 = vunpack.c.l.b16 %v276
  %v1159 = vunpack.c.l.b16 %v277
  %v1160 = vunpack.c.l.b16 %v278
  %v1161 = vpack.c.b16 %v1146, %v1145
  %v1162 = vpack.c.b16 %v1148, %v1147
  %v1163 = vpack.c.b16 %v1150, %v1149
  %v1164 = vpack.c.b16 %v1152, %v1151
  %v1165 = vpack.c.b16 %v1154, %v1153
  %v1166 = vpack.c.b16 %v1156, %v1155
  %v1167 = vpack.c.b16 %v1158, %v1157
  %v1168 = vpack.c.b16 %v1160, %v1159
  %1177 = vmatpush.bf16.msra.mxu0 %v1168
  %1178 = vmatpush.bf16.msra.mxu0 %v1167
  %1179 = vmatpush.bf16.msra.mxu0 %v1166
  %1180 = vmatpush.bf16.msra.mxu0 %v1165
  %1181 = vmatpush.bf16.msra.mxu0 %v1164
  %1182 = vmatpush.bf16.msra.mxu0 %v1163
  %1183 = vmatpush.bf16.msra.mxu0 %v1162
  %1184 = vmatpush.bf16.msra.mxu0 %v1161
  %1185 = vmatmul.bf16.gmra.mxu0 %v231
  %v1186 = vpop.f32.mrf.mxu0
  %v1187 = vadd.f32 %v970, %v1186
  %v1188 = vpop.f32.mrf.mxu0
  %v1189 = vadd.f32 %v972, %v1188
  %1190 = vmatmul.bf16.gmra.mxu0 %v232
  %v1191 = vpop.f32.mrf.mxu0
  %v1192 = vadd.f32 %v975, %v1191
  %v1193 = vpop.f32.mrf.mxu0
  %v1194 = vadd.f32 %v977, %v1193
  %1195 = vmatmul.bf16.gmra.mxu0 %v233
  %v1196 = vpop.f32.mrf.mxu0
  %v1197 = vadd.f32 %v980, %v1196
  %v1198 = vpop.f32.mrf.mxu0
  %v1199 = vadd.f32 %v982, %v1198
  %1200 = vmatmul.bf16.gmra.mxu0 %v234
  %v1201 = vpop.f32.mrf.mxu0
  %v1202 = vadd.f32 %v985, %v1201
  %v1203 = vpop.f32.mrf.mxu0
  %v1204 = vadd.f32 %v987, %v1203
  %1205 = vmatmul.bf16.gmra.mxu0 %v235
  %v1206 = vpop.f32.mrf.mxu0
  %v1207 = vadd.f32 %v990, %v1206
  %v1208 = vpop.f32.mrf.mxu0
  %v1209 = vadd.f32 %v992, %v1208
  %1210 = vmatmul.bf16.gmra.mxu0 %v236
  %v1211 = vpop.f32.mrf.mxu0
  %v1212 = vadd.f32 %v995, %v1211
  %v1213 = vpop.f32.mrf.mxu0
  %v1214 = vadd.f32 %v997, %v1213
  %1215 = vmatmul.bf16.gmra.mxu0 %v237
  %v1216 = vpop.f32.mrf.mxu0
  %v1217 = vadd.f32 %v1000, %v1216
  %v1218 = vpop.f32.mrf.mxu0
  %v1219 = vadd.f32 %v1002, %v1218
  %1220 = vmatmul.bf16.gmra.mxu0 %v238
  %v1221 = vpop.f32.mrf.mxu0
  %v1222 = vadd.f32 %v1005, %v1221
  %v1223 = vpop.f32.mrf.mxu0
  %v1224 = vadd.f32 %v1007, %v1223
  %1225 = vmatmul.bf16.gmra.mxu0 %v239
  %v1226 = vpop.f32.mrf.mxu0
  %v1227 = vadd.f32 %v1010, %v1226
  %v1228 = vpop.f32.mrf.mxu0
  %v1229 = vadd.f32 %v1012, %v1228
  %1230 = vmatmul.bf16.gmra.mxu0 %v240
  %v1231 = vpop.f32.mrf.mxu0
  %v1232 = vadd.f32 %v1015, %v1231
  %v1233 = vpop.f32.mrf.mxu0
  %v1234 = vadd.f32 %v1017, %v1233
  %1235 = vmatmul.bf16.gmra.mxu0 %v241
  %v1236 = vpop.f32.mrf.mxu0
  %v1237 = vadd.f32 %v1020, %v1236
  %v1238 = vpop.f32.mrf.mxu0
  %v1239 = vadd.f32 %v1022, %v1238
  %1240 = vmatmul.bf16.gmra.mxu0 %v242
  %v1241 = vpop.f32.mrf.mxu0
  %v1242 = vadd.f32 %v1025, %v1241
  %v1243 = vpop.f32.mrf.mxu0
  %v1244 = vadd.f32 %v1027, %v1243
  %1245 = vmatmul.bf16.gmra.mxu0 %v243
  %v1246 = vpop.f32.mrf.mxu0
  %v1247 = vadd.f32 %v1030, %v1246
  %v1248 = vpop.f32.mrf.mxu0
  %v1249 = vadd.f32 %v1032, %v1248
  %1250 = vmatmul.bf16.gmra.mxu0 %v244
  %v1251 = vpop.f32.mrf.mxu0
  %v1252 = vadd.f32 %v1035, %v1251
  %v1253 = vpop.f32.mrf.mxu0
  %v1254 = vadd.f32 %v1037, %v1253
  %1255 = vmatmul.bf16.gmra.mxu0 %v245
  %v1256 = vpop.f32.mrf.mxu0
  %v1257 = vadd.f32 %v1040, %v1256
  %v1258 = vpop.f32.mrf.mxu0
  %v1259 = vadd.f32 %v1042, %v1258
  %1260 = vmatmul.bf16.gmra.mxu0 %v246
  %v1261 = vpop.f32.mrf.mxu0
  %v1262 = vadd.f32 %v1045, %v1261
  %v1263 = vpop.f32.mrf.mxu0
  %v1264 = vadd.f32 %v1047, %v1263
  %1265 = vmatmul.bf16.gmra.mxu0 %v247
  %v1266 = vpop.f32.mrf.mxu0
  %v1267 = vadd.f32 %v1050, %v1266
  %v1268 = vpop.f32.mrf.mxu0
  %v1269 = vadd.f32 %v1052, %v1268
  %1270 = vmatmul.bf16.gmra.mxu0 %v248
  %v1271 = vpop.f32.mrf.mxu0
  %v1272 = vadd.f32 %v1055, %v1271
  %v1273 = vpop.f32.mrf.mxu0
  %v1274 = vadd.f32 %v1057, %v1273
  %1275 = vmatmul.bf16.gmra.mxu0 %v249
  %v1276 = vpop.f32.mrf.mxu0
  %v1277 = vadd.f32 %v1060, %v1276
  %v1278 = vpop.f32.mrf.mxu0
  %v1279 = vadd.f32 %v1062, %v1278
  %1280 = vmatmul.bf16.gmra.mxu0 %v250
  %v1281 = vpop.f32.mrf.mxu0
  %v1282 = vadd.f32 %v1065, %v1281
  %v1283 = vpop.f32.mrf.mxu0
  %v1284 = vadd.f32 %v1067, %v1283
  %1285 = vmatmul.bf16.gmra.mxu0 %v251
  %v1286 = vpop.f32.mrf.mxu0
  %v1287 = vadd.f32 %v1070, %v1286
  %v1288 = vpop.f32.mrf.mxu0
  %v1289 = vadd.f32 %v1072, %v1288
  %1290 = vmatmul.bf16.gmra.mxu0 %v252
  %v1291 = vpop.f32.mrf.mxu0
  %v1292 = vadd.f32 %v1075, %v1291
  %v1293 = vpop.f32.mrf.mxu0
  %v1294 = vadd.f32 %v1077, %v1293
  %1295 = vmatmul.bf16.gmra.mxu0 %v253
  %v1296 = vpop.f32.mrf.mxu0
  %v1297 = vadd.f32 %v1080, %v1296
  %v1298 = vpop.f32.mrf.mxu0
  %v1299 = vadd.f32 %v1082, %v1298
  %1300 = vmatmul.bf16.gmra.mxu0 %v254
  %v1301 = vpop.f32.mrf.mxu0
  %v1302 = vadd.f32 %v1085, %v1301
  %v1303 = vpop.f32.mrf.mxu0
  %v1304 = vadd.f32 %v1087, %v1303
  %1305 = vmatmul.bf16.gmra.mxu0 %v255
  %v1306 = vpop.f32.mrf.mxu0
  %v1307 = vadd.f32 %v1090, %v1306
  %v1308 = vpop.f32.mrf.mxu0
  %v1309 = vadd.f32 %v1092, %v1308
  %1310 = vmatmul.bf16.gmra.mxu0 %v256
  %v1311 = vpop.f32.mrf.mxu0
  %v1312 = vadd.f32 %v1095, %v1311
  %v1313 = vpop.f32.mrf.mxu0
  %v1314 = vadd.f32 %v1097, %v1313
  %1315 = vmatmul.bf16.gmra.mxu0 %v257
  %v1316 = vpop.f32.mrf.mxu0
  %v1317 = vadd.f32 %v1100, %v1316
  %v1318 = vpop.f32.mrf.mxu0
  %v1319 = vadd.f32 %v1102, %v1318
  %1320 = vmatmul.bf16.gmra.mxu0 %v258
  %v1321 = vpop.f32.mrf.mxu0
  %v1322 = vadd.f32 %v1105, %v1321
  %v1323 = vpop.f32.mrf.mxu0
  %v1324 = vadd.f32 %v1107, %v1323
  %1325 = vmatmul.bf16.gmra.mxu0 %v259
  %v1326 = vpop.f32.mrf.mxu0
  %v1327 = vadd.f32 %v1110, %v1326
  %v1328 = vpop.f32.mrf.mxu0
  %v1329 = vadd.f32 %v1112, %v1328
  %1330 = vmatmul.bf16.gmra.mxu0 %v260
  %v1331 = vpop.f32.mrf.mxu0
  %v1332 = vadd.f32 %v1115, %v1331
  %v1333 = vpop.f32.mrf.mxu0
  %v1334 = vadd.f32 %v1117, %v1333
  %1335 = vmatmul.bf16.gmra.mxu0 %v261
  %v1336 = vpop.f32.mrf.mxu0
  %v1337 = vadd.f32 %v1120, %v1336
  %v1338 = vpop.f32.mrf.mxu0
  %v1339 = vadd.f32 %v1122, %v1338
  %1340 = vmatmul.bf16.gmra.mxu0 %v262
  %v1341 = vpop.f32.mrf.mxu0
  %v1342 = vadd.f32 %v1125, %v1341
  %v1343 = vpop.f32.mrf.mxu0
  %v1344 = vadd.f32 %v1127, %v1343
  %1345 = vdwg.mxu0
  %v1346 = vld [vmem:[%s4] sm:$0x1]
  %v1348 = vperm.slane %v1346, 0
  %v1350 = vadd.f32 %v1187, %v1348
  %v1351 = vadd.f32 %v1189, %v1348
  %v1352 = vadd.f32 %v1192, %v1348
  %v1353 = vadd.f32 %v1194, %v1348
  %v1354 = vadd.f32 %v1197, %v1348
  %v1355 = vadd.f32 %v1199, %v1348
  %v1356 = vadd.f32 %v1202, %v1348
  %v1357 = vadd.f32 %v1204, %v1348
  %v1358 = vadd.f32 %v1207, %v1348
  %v1359 = vadd.f32 %v1209, %v1348
  %v1360 = vadd.f32 %v1212, %v1348
  %v1361 = vadd.f32 %v1214, %v1348
  %v1362 = vadd.f32 %v1217, %v1348
  %v1363 = vadd.f32 %v1219, %v1348
  %v1364 = vadd.f32 %v1222, %v1348
  %v1365 = vadd.f32 %v1224, %v1348
  %v1366 = vadd.f32 %v1227, %v1348
  %v1367 = vadd.f32 %v1229, %v1348
  %v1368 = vadd.f32 %v1232, %v1348
  %v1369 = vadd.f32 %v1234, %v1348
  %v1370 = vadd.f32 %v1237, %v1348
  %v1371 = vadd.f32 %v1239, %v1348
  %v1372 = vadd.f32 %v1242, %v1348
  %v1373 = vadd.f32 %v1244, %v1348
  %v1374 = vadd.f32 %v1247, %v1348
  %v1375 = vadd.f32 %v1249, %v1348
  %v1376 = vadd.f32 %v1252, %v1348
  %v1377 = vadd.f32 %v1254, %v1348
  %v1378 = vadd.f32 %v1257, %v1348
  %v1379 = vadd.f32 %v1259, %v1348
  %v1380 = vadd.f32 %v1262, %v1348
  %v1381 = vadd.f32 %v1264, %v1348
  %v1382 = vadd.f32 %v1267, %v1348
  %v1383 = vadd.f32 %v1269, %v1348
  %v1384 = vadd.f32 %v1272, %v1348
  %v1385 = vadd.f32 %v1274, %v1348
  %v1386 = vadd.f32 %v1277, %v1348
  %v1387 = vadd.f32 %v1279, %v1348
  %v1388 = vadd.f32 %v1282, %v1348
  %v1389 = vadd.f32 %v1284, %v1348
  %v1390 = vadd.f32 %v1287, %v1348
  %v1391 = vadd.f32 %v1289, %v1348
  %v1392 = vadd.f32 %v1292, %v1348
  %v1393 = vadd.f32 %v1294, %v1348
  %v1394 = vadd.f32 %v1297, %v1348
  %v1395 = vadd.f32 %v1299, %v1348
  %v1396 = vadd.f32 %v1302, %v1348
  %v1397 = vadd.f32 %v1304, %v1348
  %v1398 = vadd.f32 %v1307, %v1348
  %v1399 = vadd.f32 %v1309, %v1348
  %v1400 = vadd.f32 %v1312, %v1348
  %v1401 = vadd.f32 %v1314, %v1348
  %v1402 = vadd.f32 %v1317, %v1348
  %v1403 = vadd.f32 %v1319, %v1348
  %v1404 = vadd.f32 %v1322, %v1348
  %v1405 = vadd.f32 %v1324, %v1348
  %v1406 = vadd.f32 %v1327, %v1348
  %v1407 = vadd.f32 %v1329, %v1348
  %v1408 = vadd.f32 %v1332, %v1348
  %v1409 = vadd.f32 %v1334, %v1348
  %v1410 = vadd.f32 %v1337, %v1348
  %v1411 = vadd.f32 %v1339, %v1348
  %v1412 = vadd.f32 %v1342, %v1348
  %v1413 = vadd.f32 %v1344, %v1348
  %1414 = vst [vmem:[%s5] sm:$0xff] %v1350
  %1415 = vst [vmem:[%s5 + $0x8] sm:$0xff] %v1351
  %1416 = vst [vmem:[%s5 + $0x10] sm:$0xff] %v1352
  %1417 = vst [vmem:[%s5 + $0x18] sm:$0xff] %v1353
  %1418 = vst [vmem:[%s5 + $0x20] sm:$0xff] %v1354
  %1419 = vst [vmem:[%s5 + $0x28] sm:$0xff] %v1355
  %1420 = vst [vmem:[%s5 + $0x30] sm:$0xff] %v1356
  %1421 = vst [vmem:[%s5 + $0x38] sm:$0xff] %v1357
  %1422 = vst [vmem:[%s5 + $0x40] sm:$0xff] %v1358
  %1423 = vst [vmem:[%s5 + $0x48] sm:$0xff] %v1359
  %1424 = vst [vmem:[%s5 + $0x50] sm:$0xff] %v1360
  %1425 = vst [vmem:[%s5 + $0x58] sm:$0xff] %v1361
  %1426 = vst [vmem:[%s5 + $0x60] sm:$0xff] %v1362
  %1427 = vst [vmem:[%s5 + $0x68] sm:$0xff] %v1363
  %1428 = vst [vmem:[%s5 + $0x70] sm:$0xff] %v1364
  %1429 = vst [vmem:[%s5 + $0x78] sm:$0xff] %v1365
  %1430 = vst [vmem:[%s5 + $0x80] sm:$0xff] %v1366
  %1431 = vst [vmem:[%s5 + $0x88] sm:$0xff] %v1367
  %1432 = vst [vmem:[%s5 + $0x90] sm:$0xff] %v1368
  %1433 = vst [vmem:[%s5 + $0x98] sm:$0xff] %v1369
  %1434 = vst [vmem:[%s5 + $0xa0] sm:$0xff] %v1370
  %1435 = vst [vmem:[%s5 + $0xa8] sm:$0xff] %v1371
  %1436 = vst [vmem:[%s5 + $0xb0] sm:$0xff] %v1372
  %1437 = vst [vmem:[%s5 + $0xb8] sm:$0xff] %v1373
  %1438 = vst [vmem:[%s5 + $0xc0] sm:$0xff] %v1374
  %1439 = vst [vmem:[%s5 + $0xc8] sm:$0xff] %v1375
  %1440 = vst [vmem:[%s5 + $0xd0] sm:$0xff] %v1376
  %1441 = vst [vmem:[%s5 + $0xd8] sm:$0xff] %v1377
  %1442 = vst [vmem:[%s5 + $0xe0] sm:$0xff] %v1378
  %1443 = vst [vmem:[%s5 + $0xe8] sm:$0xff] %v1379
  %1444 = vst [vmem:[%s5 + $0xf0] sm:$0xff] %v1380
  %1445 = vst [vmem:[%s5 + $0xf8] sm:$0xff] %v1381
  %1446 = vst [vmem:[%s5 + $0x100] sm:$0xff] %v1382
  %1447 = vst [vmem:[%s5 + $0x108] sm:$0xff] %v1383
  %1448 = vst [vmem:[%s5 + $0x110] sm:$0xff] %v1384
  %1449 = vst [vmem:[%s5 + $0x118] sm:$0xff] %v1385
  %1450 = vst [vmem:[%s5 + $0x120] sm:$0xff] %v1386
  %1451 = vst [vmem:[%s5 + $0x128] sm:$0xff] %v1387
  %1452 = vst [vmem:[%s5 + $0x130] sm:$0xff] %v1388
  %1453 = vst [vmem:[%s5 + $0x138] sm:$0xff] %v1389
  %1454 = vst [vmem:[%s5 + $0x140] sm:$0xff] %v1390
  %1455 = vst [vmem:[%s5 + $0x148] sm:$0xff] %v1391
  %1456 = vst [vmem:[%s5 + $0x150] sm:$0xff] %v1392
  %1457 = vst [vmem:[%s5 + $0x158] sm:$0xff] %v1393
  %1458 = vst [vmem:[%s5 + $0x160] sm:$0xff] %v1394
  %1459 = vst [vmem:[%s5 + $0x168] sm:$0xff] %v1395
  %1460 = vst [vmem:[%s5 + $0x170] sm:$0xff] %v1396
  %1461 = vst [vmem:[%s5 + $0x178] sm:$0xff] %v1397
  %1462 = vst [vmem:[%s5 + $0x180] sm:$0xff] %v1398
  %1463 = vst [vmem:[%s5 + $0x188] sm:$0xff] %v1399
  %1464 = vst [vmem:[%s5 + $0x190] sm:$0xff] %v1400
  %1465 = vst [vmem:[%s5 + $0x198] sm:$0xff] %v1401
  %1466 = vst [vmem:[%s5 + $0x1a0] sm:$0xff] %v1402
  %1467 = vst [vmem:[%s5 + $0x1a8] sm:$0xff] %v1403
  %1468 = vst [vmem:[%s5 + $0x1b0] sm:$0xff] %v1404
  %1469 = vst [vmem:[%s5 + $0x1b8] sm:$0xff] %v1405
  %1470 = vst [vmem:[%s5 + $0x1c0] sm:$0xff] %v1406
  %1471 = vst [vmem:[%s5 + $0x1c8] sm:$0xff] %v1407
  %1472 = vst [vmem:[%s5 + $0x1d0] sm:$0xff] %v1408
  %1473 = vst [vmem:[%s5 + $0x1d8] sm:$0xff] %v1409
  %1474 = vst [vmem:[%s5 + $0x1e0] sm:$0xff] %v1410
  %1475 = vst [vmem:[%s5 + $0x1e8] sm:$0xff] %v1411
  %1476 = vst [vmem:[%s5 + $0x1f0] sm:$0xff] %v1412
  %1477 = vst [vmem:[%s5 + $0x1f8] sm:$0xff] %v1413
  // Predicated region
  $region22: #{cnn_forward.1} parent=0 // pred_check
    _
  $region23: #{cnn_forward.1} parent=0 // pred_check_branch
    %1479 = sbr.rel (0) target = $region25
  $region24: #{cnn_forward.1} parent=0 // pred_region
    _
  $region25: #{cnn_forward.1} parent=0 // pred_fallthru
    _
  // Predicated region
  $region26: #{cnn_forward.1} parent=0 // pred_check
    _
  $region27: #{cnn_forward.1} parent=0 // pred_check_branch
    %1481 = sbr.rel (0) target = $region29
  $region28: #{cnn_forward.1} parent=0 // pred_region
    _
  $region29: #{cnn_forward.1} parent=0 // pred_fallthru
    _

</llo_original>
